<compile_context>
chip_gen: v6e
topology: v6e:2x2x1
jax: 0.10.0
libtpu: 0.0.40
codegen_flags: <defaults>
</compile_context>

<pallas_src>
import functools

import jax
import jax.numpy as jnp
from jax.experimental import pallas as pl
from jax.experimental.pallas import tpu as pltpu

HIDDEN = 256
BN_EPS = 1e-5

# Row indices inside the packed small-parameter tile (see pack_params()).
_ROW_B1, _ROW_GAMMA, _ROW_BETA, _ROW_B2, _ROW_W3, _ROW_B3 = range(6)
_ROW_W1A0 = 6   # rows 6 .. 6 + action_size - 1 hold the action columns of fc1


def _value_network_kernel(states_ref, actions_ref, w1s_ref, w2_ref, pk_ref,
                          out_ref, *, action_size):
    # Hoist every small-parameter row read once (each used exactly once below).
    b1 = pk_ref[_ROW_B1:_ROW_B1 + 1, :]
    gamma = pk_ref[_ROW_GAMMA:_ROW_GAMMA + 1, :]
    beta = pk_ref[_ROW_BETA:_ROW_BETA + 1, :]
    b2 = pk_ref[_ROW_B2:_ROW_B2 + 1, :]
    w3 = pk_ref[_ROW_W3:_ROW_W3 + 1, :]
    b3 = pk_ref[_ROW_B3:_ROW_B3 + 1, 0:1]

    # ---- fc1 + relu ---------------------------------------------------------
    # State part: one bf16 MXU push with K = state_size, f32 accumulation.
    h1 = jnp.dot(states_ref[...].astype(jnp.bfloat16), w1s_ref[...],
                 preferred_element_type=jnp.float32)
    h1 = h1 + b1
    # Action part: action_size is tiny, so broadcast FMAs on the VPU instead
    # of a degenerate K=2 MXU matmul.  Stays f32.
    acts = actions_ref[...]
    for j in range(action_size):
        w1a_j = pk_ref[_ROW_W1A0 + j:_ROW_W1A0 + j + 1, :]
        h1 = h1 + acts[:, j:j + 1] * w1a_j
    h1 = jnp.maximum(h1, 0.0)

    # ---- BatchNorm1d (training mode: biased per-micro-batch statistics) -----
    mean = jnp.mean(h1, axis=0, keepdims=True)
    cent = h1 - mean
    var = jnp.mean(cent * cent, axis=0, keepdims=True)
    hn = cent * jax.lax.rsqrt(var + BN_EPS)
    hn = hn * gamma + beta

    # ---- fc2 + relu ----------------------------------------------------------
    h2 = jnp.dot(hn.astype(jnp.bfloat16), w2_ref[...],
                 preferred_element_type=jnp.float32)
    h2 = jnp.maximum(h2 + b2, 0.0)

    # ---- fc3 (N = 1): VPU multiply + lane reduction, no MXU ------------------
    q = jnp.sum(h2 * w3, axis=-1, keepdims=True)
    out_ref[...] = q + b3


def value_network_forward(states, actions, packed):
    """Critic forward pass.

    states:  (T, B, state_size) or (B, state_size)  float32
    actions: (T, B, action_size) or (B, action_size) float32
    Returns Q(s,a): (T, B, 1) or (B, 1) float32.  BatchNorm statistics are
    computed independently inside each micro-batch of B rows (same semantics
    as calling the PyTorch module once per micro-batch).
    """
    squeeze = states.ndim == 2
    if squeeze:
        states, actions = states[None], actions[None]
    T, B, S = states.shape
    A = actions.shape[-1]
    if B < 2:
        # PyTorch BatchNorm1d raises in training mode for a batch of 1.
        raise ValueError("BatchNorm1d needs at least 2 rows per micro-batch.")

    w1s, w2, pk = packed["w1s"], packed["w2"], packed["pk"]
    pk_rows = pk.shape[0]
    kernel = functools.partial(_value_network_kernel, action_size=A)

    flops = 2 * T * B * (S * HIDDEN + A * HIDDEN + HIDDEN * HIDDEN + HIDDEN)
    bytes_accessed = (w1s.size * w1s.dtype.itemsize
                      + w2.size * w2.dtype.itemsize
                      + pk.size * pk.dtype.itemsize
                      + states.size * 4 + actions.size * 4 + T * B * 4)
    cost = pl.CostEstimate(flops=flops, transcendentals=T * HIDDEN,
                           bytes_accessed=bytes_accessed)

    out = pl.pallas_call(
        kernel,
        out_shape=jax.ShapeDtypeStruct((T, B, 1), jnp.float32),
        grid_spec=pltpu.PrefetchScalarGridSpec(
            num_scalar_prefetch=0,
            grid=(T,),
            in_specs=[
                # Per-step activation tiles (double-buffered by Pallas).
                pl.BlockSpec((None, B, S), lambda t: (t, 0, 0)),
                pl.BlockSpec((None, B, A), lambda t: (t, 0, 0)),
                # Weights: constant block index -> DMA'd once, VMEM-resident.
                pl.BlockSpec((S, HIDDEN), lambda t: (0, 0)),
                pl.BlockSpec((HIDDEN, HIDDEN), lambda t: (0, 0)),
                pl.BlockSpec((pk_rows, HIDDEN), lambda t: (0, 0)),
            ],
            out_specs=pl.BlockSpec((None, B, 1), lambda t: (t, 0, 0)),
        ),
        compiler_params=pltpu.CompilerParams(
            # v7x: shard independent micro-batches across both TensorCores.
            dimension_semantics=("parallel",)),
        cost_estimate=cost,
    )(states, actions, w1s, w2, pk)
    return out[0] if squeeze else out


def init_raw_params(key, state_size, action_size):
    """Deterministic synthetic init matching ValueNetwork.reset_parameters."""
    in_dim = state_size + action_size
    k = jax.random.split(key, 6)
    lim_h = 1.0 / jnp.sqrt(float(HIDDEN))   # hidden_init uses weight.size()[0] == 256
    # Weights stored as (in, out) == torch weight transposed.
    w1 = jax.random.uniform(k[0], (in_dim, HIDDEN), jnp.float32, -lim_h, lim_h)
    w2 = jax.random.uniform(k[1], (HIDDEN, HIDDEN), jnp.float32, -lim_h, lim_h)
    w3 = jax.random.uniform(k[2], (HIDDEN, 1), jnp.float32, -0.003, 0.003)
    # Biases: torch default Linear bias init U(-1/sqrt(fan_in), 1/sqrt(fan_in)).
    b1 = jax.random.uniform(k[3], (1, HIDDEN), jnp.float32,
                            -1.0 / jnp.sqrt(float(in_dim)), 1.0 / jnp.sqrt(float(in_dim)))
    b2 = jax.random.uniform(k[4], (1, HIDDEN), jnp.float32,
                            -1.0 / jnp.sqrt(float(HIDDEN)), 1.0 / jnp.sqrt(float(HIDDEN)))
    b3 = jax.random.uniform(k[5], (1, 1), jnp.float32,
                            -1.0 / jnp.sqrt(float(HIDDEN)), 1.0 / jnp.sqrt(float(HIDDEN)))
    # Fresh BatchNorm1d: gamma=1, beta=0 (running stats unused in training mode).
    gamma = jnp.ones((1, HIDDEN), jnp.float32)
    beta = jnp.zeros((1, HIDDEN), jnp.float32)
    return dict(w1=w1, b1=b1, w2=w2, b2=b2, w3=w3, b3=b3, gamma=gamma, beta=beta)


def pack_params(raw, state_size, action_size):
    """One-time packing: split W1, cast big weights to bf16, stack tiny params."""
    w1s = raw["w1"][:state_size, :].astype(jnp.bfloat16)   # (state_size, 256) bf16
    w1a = raw["w1"][state_size:, :]                        # (action_size, 256) f32 (VPU path)
    rows = [raw["b1"], raw["gamma"], raw["beta"], raw["b2"],
            raw["w3"].reshape(1, HIDDEN),                  # fc3 weight as a lane row
            jnp.full((1, HIDDEN), raw["b3"][0, 0], jnp.float32)]
    pk = jnp.concatenate(rows + [w1a], axis=0)             # (6 + action_size, 256)
    pad = (-pk.shape[0]) % 8                               # sublane-align once, at init
    if pad:
        pk = jnp.pad(pk, ((0, pad), (0, 0)))
    return dict(w1s=w1s, w2=raw["w2"].astype(jnp.bfloat16), pk=pk)


def _reference_f32(states, actions, raw):
    """Pure-f32 reference with exact PyTorch forward semantics."""
    xs = jnp.concatenate([states, actions], axis=-1)
    h1 = jnp.maximum(xs @ raw["w1"] + raw["b1"], 0.0)
    mean = jnp.mean(h1, axis=0, keepdims=True)
    var = jnp.mean((h1 - mean) ** 2, axis=0, keepdims=True)
    hn = (h1 - mean) * jax.lax.rsqrt(var + BN_EPS) * raw["gamma"] + raw["beta"]
    h2 = jnp.maximum(hn @ raw["w2"] + raw["b2"], 0.0)
    return h2 @ raw["w3"] + raw["b3"]


def _reference_bf16_matched(states, actions, raw, state_size):
    """Reference with the same bf16 roundings as the kernel (tight check)."""
    f32 = jnp.float32
    w1s = raw["w1"][:state_size].astype(jnp.bfloat16).astype(f32)
    w1a = raw["w1"][state_size:]
    w2 = raw["w2"].astype(jnp.bfloat16).astype(f32)
    h1 = states.astype(jnp.bfloat16).astype(f32) @ w1s + raw["b1"]
    h1 = jnp.maximum(h1 + actions @ w1a, 0.0)
    mean = jnp.mean(h1, axis=0, keepdims=True)
    var = jnp.mean((h1 - mean) ** 2, axis=0, keepdims=True)
    hn = (h1 - mean) * jax.lax.rsqrt(var + BN_EPS) * raw["gamma"] + raw["beta"]
    h2 = jnp.maximum(hn.astype(jnp.bfloat16).astype(f32) @ w2 + raw["b2"], 0.0)
    return h2 @ raw["w3"] + raw["b3"]


if __name__ == "__main__":
    # Tennis-like sizes: 24-dim state, 2-dim action, micro-batch 8, T=4 stacked.
    T, B, STATE_SIZE, ACTION_SIZE = 4, 8, 24, 2
    key = jax.random.PRNGKey(0)
    k_s, k_a, k_p = jax.random.split(key, 3)
    states = jax.random.normal(k_s, (T, B, STATE_SIZE), jnp.float32)
    actions = jax.random.uniform(k_a, (T, B, ACTION_SIZE), jnp.float32, -1.0, 1.0)

    raw = init_raw_params(k_p, STATE_SIZE, ACTION_SIZE)
    packed = pack_params(raw, STATE_SIZE, ACTION_SIZE)

    # Stacked (T, B, *) path: weights DMA'd once, grid over T micro-batches.
    q = value_network_forward(states, actions, packed)
    q = jax.block_until_ready(q)
    assert q.shape == (T, B, 1)

    # Single micro-batch convenience path.
    q0 = value_network_forward(states[0], actions[0], packed)
    q0 = jax.block_until_ready(q0)
    assert q0.shape == (B, 1)
    assert jnp.allclose(q0, q[0], atol=1e-5, rtol=1e-5)

    # Tight check vs bf16-matched reference, loose check vs exact f32 reference.
    q_match = jax.vmap(
        lambda s, a: _reference_bf16_matched(s, a, raw, STATE_SIZE))(states, actions)
    q_f32 = jax.vmap(lambda s, a: _reference_f32(s, a, raw))(states, actions)
    assert jnp.allclose(q, q_match, atol=5e-4, rtol=1e-3)
    assert jnp.allclose(q, q_f32, atol=3e-3, rtol=3e-2)

    print("KERNEL_OK")
</pallas_src>

<mosaic_0001>
module attributes {stable_mosaic.version = 11 : i64} {
  func.func @_value_network_kernel(%arg0: i32, %arg1: memref<1x8x24xf32, #tpu.memory_space<vmem>>, %arg2: memref<1x8x2xf32, #tpu.memory_space<vmem>>, %arg3: memref<24x256xbf16, #tpu.memory_space<vmem>>, %arg4: memref<256x256xbf16, #tpu.memory_space<vmem>>, %arg5: memref<8x256xf32, #tpu.memory_space<vmem>>, %arg6: memref<1x8x1xf32, #tpu.memory_space<vmem>>) attributes {dimension_semantics = [#tpu.dimension_semantics<parallel>], iteration_bounds = array<i64: 4>, scalar_prefetch = 0 : i64, scratch_operands = 0 : i64, tpu.core_type = #tpu.core_type<tc>, window_params = [{transform_indices = @transform_0, window_bounds = array<i64: 1, 8, 24>}, {transform_indices = @transform_1, window_bounds = array<i64: 1, 8, 2>}, {pipeline_mode = #tpu.pipeline_mode<synchronous>, transform_indices = @transform_2, window_bounds = array<i64: 24, 256>}, {pipeline_mode = #tpu.pipeline_mode<synchronous>, transform_indices = @transform_3, window_bounds = array<i64: 256, 256>}, {pipeline_mode = #tpu.pipeline_mode<synchronous>, transform_indices = @transform_4, window_bounds = array<i64: 8, 256>}, {transform_indices = @transform_5, window_bounds = array<i64: 1, 8, 1>}]} {
    %c0 = arith.constant 0 : index
    %c0_0 = arith.constant 0 : index
    %0 = vector.load %arg5[%c0, %c0_0] : memref<8x256xf32, #tpu.memory_space<vmem>>, vector<1x256xf32>
    %c1 = arith.constant 1 : index
    %c0_1 = arith.constant 0 : index
    %1 = vector.load %arg5[%c1, %c0_1] : memref<8x256xf32, #tpu.memory_space<vmem>>, vector<1x256xf32>
    %c2 = arith.constant 2 : index
    %c0_2 = arith.constant 0 : index
    %2 = vector.load %arg5[%c2, %c0_2] : memref<8x256xf32, #tpu.memory_space<vmem>>, vector<1x256xf32>
    %c3 = arith.constant 3 : index
    %c0_3 = arith.constant 0 : index
    %3 = vector.load %arg5[%c3, %c0_3] : memref<8x256xf32, #tpu.memory_space<vmem>>, vector<1x256xf32>
    %c4 = arith.constant 4 : index
    %c0_4 = arith.constant 0 : index
    %4 = vector.load %arg5[%c4, %c0_4] : memref<8x256xf32, #tpu.memory_space<vmem>>, vector<1x256xf32>
    %c5 = arith.constant 5 : index
    %c0_5 = arith.constant 0 : index
    %5 = vector.load %arg5[%c5, %c0_5] : memref<8x256xf32, #tpu.memory_space<vmem>>, vector<1x1xf32>
    %c0_6 = arith.constant 0 : index
    %c0_7 = arith.constant 0 : index
    %c0_8 = arith.constant 0 : index
    %6 = vector.load %arg1[%c0_6, %c0_7, %c0_8] : memref<1x8x24xf32, #tpu.memory_space<vmem>>, vector<1x8x24xf32>
    %7 = vector.shape_cast %6 : vector<1x8x24xf32> to vector<8x24xf32>
    %8 = arith.truncf %7 : vector<8x24xf32> to vector<8x24xbf16>
    %c0_9 = arith.constant 0 : index
    %c0_10 = arith.constant 0 : index
    %9 = vector.load %arg3[%c0_9, %c0_10] : memref<24x256xbf16, #tpu.memory_space<vmem>>, vector<24x256xbf16>
    %cst = arith.constant dense<0.000000e+00> : vector<8x256xf32>
    %10 = tpu.matmul %8, %9, %cst {dimension_numbers = #tpu.dot_dimension_numbers<[1], [0], [0], [1], [0, 0, 1, 1], [], []>} : vector<8x24xbf16>, vector<24x256xbf16>, vector<8x256xf32> -> vector<8x256xf32>
    %11 = vector.broadcast %0 : vector<1x256xf32> to vector<8x256xf32>
    %12 = arith.addf %10, %11 : vector<8x256xf32>
    %c0_11 = arith.constant 0 : index
    %c0_12 = arith.constant 0 : index
    %c0_13 = arith.constant 0 : index
    %13 = vector.load %arg2[%c0_11, %c0_12, %c0_13] : memref<1x8x2xf32, #tpu.memory_space<vmem>>, vector<1x8x2xf32>
    %14 = vector.shape_cast %13 : vector<1x8x2xf32> to vector<8x2xf32>
    %c6 = arith.constant 6 : index
    %c0_14 = arith.constant 0 : index
    %15 = vector.load %arg5[%c6, %c0_14] : memref<8x256xf32, #tpu.memory_space<vmem>>, vector<1x256xf32>
    %16 = vector.extract_strided_slice %14 {offsets = [0, 0], sizes = [8, 1], strides = [1, 1]} : vector<8x2xf32> to vector<8x1xf32>
    %17 = vector.broadcast %16 : vector<8x1xf32> to vector<8x256xf32>
    %18 = vector.broadcast %15 : vector<1x256xf32> to vector<8x256xf32>
    %19 = arith.mulf %17, %18 : vector<8x256xf32>
    %20 = arith.addf %12, %19 : vector<8x256xf32>
    %c7 = arith.constant 7 : index
    %c0_15 = arith.constant 0 : index
    %21 = vector.load %arg5[%c7, %c0_15] : memref<8x256xf32, #tpu.memory_space<vmem>>, vector<1x256xf32>
    %22 = vector.extract_strided_slice %14 {offsets = [0, 1], sizes = [8, 1], strides = [1, 1]} : vector<8x2xf32> to vector<8x1xf32>
    %23 = vector.broadcast %22 : vector<8x1xf32> to vector<8x256xf32>
    %24 = vector.broadcast %21 : vector<1x256xf32> to vector<8x256xf32>
    %25 = arith.mulf %23, %24 : vector<8x256xf32>
    %26 = arith.addf %20, %25 : vector<8x256xf32>
    %cst_16 = arith.constant 0.000000e+00 : f32
    %27 = vector.broadcast %cst_16 : f32 to vector<8x256xf32>
    %28 = arith.maximumf %26, %27 : vector<8x256xf32>
    %cst_17 = arith.constant dense<0.000000e+00> : vector<256xf32>
    %29 = vector.multi_reduction <add>, %28, %cst_17 [0] : vector<8x256xf32> to vector<256xf32>
    %30 = vector.shape_cast %29 : vector<256xf32> to vector<1x256xf32>
    %cst_18 = arith.constant 8.000000e+00 : f32
    %31 = vector.broadcast %cst_18 : f32 to vector<1x256xf32>
    %32 = arith.divf %30, %31 : vector<1x256xf32>
    %33 = vector.broadcast %32 : vector<1x256xf32> to vector<8x256xf32>
    %34 = arith.subf %28, %33 : vector<8x256xf32>
    %35 = arith.mulf %34, %34 : vector<8x256xf32>
    %cst_19 = arith.constant dense<0.000000e+00> : vector<256xf32>
    %36 = vector.multi_reduction <add>, %35, %cst_19 [0] : vector<8x256xf32> to vector<256xf32>
    %37 = vector.shape_cast %36 : vector<256xf32> to vector<1x256xf32>
    %cst_20 = arith.constant 8.000000e+00 : f32
    %38 = vector.broadcast %cst_20 : f32 to vector<1x256xf32>
    %39 = arith.divf %37, %38 : vector<1x256xf32>
    %cst_21 = arith.constant 9.99999974E-6 : f32
    %40 = vector.broadcast %cst_21 : f32 to vector<1x256xf32>
    %41 = arith.addf %39, %40 : vector<1x256xf32>
    %42 = math.rsqrt %41 : vector<1x256xf32>
    %43 = vector.broadcast %42 : vector<1x256xf32> to vector<8x256xf32>
    %44 = arith.mulf %34, %43 : vector<8x256xf32>
    %45 = vector.broadcast %1 : vector<1x256xf32> to vector<8x256xf32>
    %46 = arith.mulf %44, %45 : vector<8x256xf32>
    %47 = vector.broadcast %2 : vector<1x256xf32> to vector<8x256xf32>
    %48 = arith.addf %46, %47 : vector<8x256xf32>
    %49 = arith.truncf %48 : vector<8x256xf32> to vector<8x256xbf16>
    %c0_22 = arith.constant 0 : index
    %c0_23 = arith.constant 0 : index
    %50 = vector.load %arg4[%c0_22, %c0_23] : memref<256x256xbf16, #tpu.memory_space<vmem>>, vector<256x256xbf16>
    %cst_24 = arith.constant dense<0.000000e+00> : vector<8x256xf32>
    %51 = tpu.matmul %49, %50, %cst_24 {dimension_numbers = #tpu.dot_dimension_numbers<[1], [0], [0], [1], [0, 0, 1, 1], [], []>} : vector<8x256xbf16>, vector<256x256xbf16>, vector<8x256xf32> -> vector<8x256xf32>
    %52 = vector.broadcast %3 : vector<1x256xf32> to vector<8x256xf32>
    %53 = arith.addf %51, %52 : vector<8x256xf32>
    %cst_25 = arith.constant 0.000000e+00 : f32
    %54 = vector.broadcast %cst_25 : f32 to vector<8x256xf32>
    %55 = arith.maximumf %53, %54 : vector<8x256xf32>
    %56 = vector.broadcast %4 : vector<1x256xf32> to vector<8x256xf32>
    %57 = arith.mulf %55, %56 : vector<8x256xf32>
    %cst_26 = arith.constant dense<0.000000e+00> : vector<8xf32>
    %58 = vector.multi_reduction <add>, %57, %cst_26 [1] : vector<8x256xf32> to vector<8xf32>
    %59 = vector.shape_cast %58 : vector<8xf32> to vector<8x1xf32>
    %60 = vector.broadcast %5 : vector<1x1xf32> to vector<8x1xf32>
    %61 = arith.addf %59, %60 : vector<8x1xf32>
    %c0_27 = arith.constant 0 : index
    %c0_28 = arith.constant 0 : index
    %c0_29 = arith.constant 0 : index
    %62 = vector.load %arg6[%c0_27, %c0_28, %c0_29] : memref<1x8x1xf32, #tpu.memory_space<vmem>>, vector<1x8x1xf32>
    %63 = vector.shape_cast %62 : vector<1x8x1xf32> to vector<8x1xf32>
    %64 = vector.shape_cast %61 : vector<8x1xf32> to vector<1x8x1xf32>
    tpu.vector_store %arg6[%c0_27, %c0_28, %c0_29], %64 {strides = array<i32>} : memref<1x8x1xf32, #tpu.memory_space<vmem>>, vector<1x8x1xf32>,
    return
  }
  func.func @transform_0(%arg0: i32) -> (i32, i32, i32) {
    %c0_i32 = arith.constant 0 : i32
    %c0_i32_0 = arith.constant 0 : i32
    %c0_i32_1 = arith.constant 0 : i32
    return %arg0, %c0_i32, %c0_i32_0 : i32, i32, i32
  }
  func.func @transform_1(%arg0: i32) -> (i32, i32, i32) {
    %c0_i32 = arith.constant 0 : i32
    %c0_i32_0 = arith.constant 0 : i32
    %c0_i32_1 = arith.constant 0 : i32
    return %arg0, %c0_i32, %c0_i32_0 : i32, i32, i32
  }
  func.func @transform_2(%arg0: i32) -> (i32, i32) {
    %c0_i32 = arith.constant 0 : i32
    %c0_i32_0 = arith.constant 0 : i32
    %c0_i32_1 = arith.constant 0 : i32
    return %c0_i32, %c0_i32_0 : i32, i32
  }
  func.func @transform_3(%arg0: i32) -> (i32, i32) {
    %c0_i32 = arith.constant 0 : i32
    %c0_i32_0 = arith.constant 0 : i32
    %c0_i32_1 = arith.constant 0 : i32
    return %c0_i32, %c0_i32_0 : i32, i32
  }
  func.func @transform_4(%arg0: i32) -> (i32, i32) {
    %c0_i32 = arith.constant 0 : i32
    %c0_i32_0 = arith.constant 0 : i32
    %c0_i32_1 = arith.constant 0 : i32
    return %c0_i32, %c0_i32_0 : i32, i32
  }
  func.func @transform_5(%arg0: i32) -> (i32, i32, i32) {
    %c0_i32 = arith.constant 0 : i32
    %c0_i32_0 = arith.constant 0 : i32
    %c0_i32_1 = arith.constant 0 : i32
    return %arg0, %c0_i32, %c0_i32_0 : i32, i32, i32
  }
}

</mosaic_0001>

<llo_original>
// kernel: tpu_custom_call.1
$region0: #{tpu_custom_call.1}
  #allocation0 [shape = 'u32[]', space=smem, size = 0x4, offset = 0x4, fixed_abs, tag = 'smem constant byte address 0x4 - core index']
  #allocation1 [shape = 'u32[144,128]{1,0:T(1,128)}', space=vmem, size = 0x12000, scoped, tag = 'internal scratch']
  %s0 = inlined_call_operand.vmem [shape: f32[4,8,24], index: 0, kind: input, shape index: {}]
  %s1 = inlined_call_operand.vmem [shape: f32[4,8,2], index: 1, kind: input, shape index: {}]
  %s2 = inlined_call_operand.hbm [shape: bf16[24,256], index: 2, kind: input, shape index: {}]
  %s3 = inlined_call_operand.hbm [shape: bf16[256,256], index: 3, kind: input, shape index: {}]
  %s4 = inlined_call_operand.hbm [shape: f32[8,256], index: 4, kind: input, shape index: {}]
  %s5 = inlined_call_operand.vmem [shape: f32[4,8,1], index: 5, kind: output, shape index: {}]
  %s6 = sld [smem:[#allocation0]]
  $region65: #{tpu_custom_call.1} parent=0
    _
  %s8 = ssub.s32 1, %s6
  %s9 = scalar_select 0, %s8, %s6
  $region1: #{tpu_custom_call.1} parent=0
    #allocation2 [shape = 'u8[12288]{0}', space=vmem, size = 0x3000, scoped, tag = 'input window, operand 2, single buffered']
    #allocation3 [shape = 's32[2]{0}', space=sflag, size = 0x8, scoped, tag = 'scoped memory for tpu_custom_call.1']
    #allocation4 [shape = 'u8[131072]{0}', space=vmem, size = 0x20000, scoped, tag = 'input window, operand 3, single buffered']
    #allocation5 [shape = 's32[1]{0}', space=sflag, size = 0x4, scoped, tag = 'scoped memory for tpu_custom_call.1']
    #allocation6 [shape = 'u8[8192]{0}', space=vmem, size = 0x2000, scoped, tag = 'input window, operand 4, single buffered']
    %10 = vsyncpa [#allocation3], 0
    %11 = vsyncpa [#allocation5], 0
    loop: start=0, step=1, limit=6
    $region2: #{tpu_custom_call.1} parent=1 // loop_pre_header
      _
    $region3: #{tpu_custom_call.1} parent=1 // loop_header
      %s13 = sphi 0, %s17
      %p14 = scmp.ge.s32.totalorder %s13, 6
      %s23 = sphi 0, %s25
      %s26 = sphi 0, %s23
      %s27 = sphi 0, %s26
      %s43 = sphi 0, %s27
      %s49 = sphi 0, %s51
      %s52 = sphi 0, %s49
      %s53 = sphi 0, %s52
      %s69 = sphi 0, %s53
      %s73 = sphi 0, %s73
      %s75 = sphi 0, %s73
      %s76 = sphi 0, %s75
      %s90 = sphi 0, %s76
      %s94 = sphi 0, %s94
      %s96 = sphi 0, %s94
      %s97 = sphi 0, %s96
      %s111 = sphi 0, %s97
      %s115 = sphi 0, %s115
      %s117 = sphi 0, %s115
      %s118 = sphi 0, %s117
      %s132 = sphi 0, %s118
      %s138 = sphi 0, %s140
      %s141 = sphi 0, %s138
      %s142 = sphi 0, %s141
      %s158 = sphi 0, %s142
    $region4: #{tpu_custom_call.1} parent=1 // loop_header_branch
      %16 = sbr.rel (%p14) target = $region8
    $region5: #{tpu_custom_call.1} parent=1 // loop_body
      %s18 = ssub.s32 %s13, 1
      %s19 = ssub.s32 %s13, 2
      %s20 = sadd.s32 %s13, 1
      %s21 = ssub.s32 %s13, %s20
      %p22 = scmp.eq.s32.totalorder %s21, 0
      %s24 = sadd.s32 %s23, 1
      %s25 = scalar_select %p22, %s23, %s24
      %p28 = pneg %p22
      %p29 = scmp.eq.s32.totalorder %s13, 3
      %p30 = por %p28, %p29
      %p31 = scmp.ne.s32.totalorder %s23, %s26
      %p32 = scmp.eq.s32.totalorder %s13, 0
      %p33 = por %p31, %p32
      %p34 = scmp.ne.s32.totalorder %s23, %s26
      %p35 = scmp.eq.s32.totalorder %s18, 3
      %p36 = por %p34, %p35
      %p37 = scmp.ne.s32.totalorder %s26, %s27
      %p38 = scmp.eq.s32.totalorder %s18, 0
      %p39 = por %p37, %p38
      %p40 = scmp.ne.s32.totalorder %s26, %s27
      %p41 = scmp.eq.s32.totalorder %s19, 3
      %p42 = por %p40, %p41
      %p44 = scmp.ne.s32.totalorder %s27, %s43
      %p45 = scmp.eq.s32.totalorder %s19, 0
      %p46 = por %p44, %p45
      %s47 = ssub.s32 %s13, %s20
      %p48 = scmp.eq.s32.totalorder %s47, 0
      %s50 = sadd.s32 %s49, 1
      %s51 = scalar_select %p48, %s49, %s50
      %p54 = pneg %p48
      %p55 = scmp.eq.s32.totalorder %s13, 3
      %p56 = por %p54, %p55
      %p57 = scmp.ne.s32.totalorder %s49, %s52
      %p58 = scmp.eq.s32.totalorder %s13, 0
      %p59 = por %p57, %p58
      %p60 = scmp.ne.s32.totalorder %s49, %s52
      %p61 = scmp.eq.s32.totalorder %s18, 3
      %p62 = por %p60, %p61
      %p63 = scmp.ne.s32.totalorder %s52, %s53
      %p64 = scmp.eq.s32.totalorder %s18, 0
      %p65 = por %p63, %p64
      %p66 = scmp.ne.s32.totalorder %s52, %s53
      %p67 = scmp.eq.s32.totalorder %s19, 3
      %p68 = por %p66, %p67
      %p70 = scmp.ne.s32.totalorder %s53, %s69
      %p71 = scmp.eq.s32.totalorder %s19, 0
      %p72 = por %p70, %p71
      %s74 = sadd.s32 %s73, 1
      %p77 = scmp.eq.s32.totalorder %s13, 3
      %p78 = scmp.ne.s32.totalorder %s73, %s75
      %p79 = scmp.eq.s32.totalorder %s13, 0
      %p80 = por %p78, %p79
      %p81 = scmp.ne.s32.totalorder %s73, %s75
      %p82 = scmp.eq.s32.totalorder %s18, 3
      %p83 = por %p81, %p82
      %p84 = scmp.ne.s32.totalorder %s75, %s76
      %p85 = scmp.eq.s32.totalorder %s18, 0
      %p86 = por %p84, %p85
      %p87 = scmp.ne.s32.totalorder %s75, %s76
      %p88 = scmp.eq.s32.totalorder %s19, 3
      %p89 = por %p87, %p88
      %p91 = scmp.ne.s32.totalorder %s76, %s90
      %p92 = scmp.eq.s32.totalorder %s19, 0
      %p93 = por %p91, %p92
      %s95 = sadd.s32 %s94, 1
      %p98 = scmp.eq.s32.totalorder %s13, 3
      %p99 = scmp.ne.s32.totalorder %s94, %s96
      %p100 = scmp.eq.s32.totalorder %s13, 0
      %p101 = por %p99, %p100
      %p102 = scmp.ne.s32.totalorder %s94, %s96
      %p103 = scmp.eq.s32.totalorder %s18, 3
      %p104 = por %p102, %p103
      %p105 = scmp.ne.s32.totalorder %s96, %s97
      %p106 = scmp.eq.s32.totalorder %s18, 0
      %p107 = por %p105, %p106
      %p108 = scmp.ne.s32.totalorder %s96, %s97
      %p109 = scmp.eq.s32.totalorder %s19, 3
      %p110 = por %p108, %p109
      %p112 = scmp.ne.s32.totalorder %s97, %s111
      %p113 = scmp.eq.s32.totalorder %s19, 0
      %p114 = por %p112, %p113
      %s116 = sadd.s32 %s115, 1
      %p119 = scmp.eq.s32.totalorder %s13, 3
      %p120 = scmp.ne.s32.totalorder %s115, %s117
      %p121 = scmp.eq.s32.totalorder %s13, 0
      %p122 = por %p120, %p121
      %p123 = scmp.ne.s32.totalorder %s115, %s117
      %p124 = scmp.eq.s32.totalorder %s18, 3
      %p125 = por %p123, %p124
      %p126 = scmp.ne.s32.totalorder %s117, %s118
      %p127 = scmp.eq.s32.totalorder %s18, 0
      %p128 = por %p126, %p127
      %p129 = scmp.ne.s32.totalorder %s117, %s118
      %p130 = scmp.eq.s32.totalorder %s19, 3
      %p131 = por %p129, %p130
      %p133 = scmp.ne.s32.totalorder %s118, %s132
      %p134 = scmp.eq.s32.totalorder %s19, 0
      %p135 = por %p133, %p134
      %s136 = ssub.s32 %s13, %s20
      %p137 = scmp.eq.s32.totalorder %s136, 0
      %s139 = sadd.s32 %s138, 1
      %s140 = scalar_select %p137, %s138, %s139
      %p143 = pneg %p137
      %p144 = scmp.eq.s32.totalorder %s13, 3
      %p145 = por %p143, %p144
      %p146 = scmp.ne.s32.totalorder %s138, %s141
      %p147 = scmp.eq.s32.totalorder %s13, 0
      %p148 = por %p146, %p147
      %p149 = scmp.ne.s32.totalorder %s138, %s141
      %p150 = scmp.eq.s32.totalorder %s18, 3
      %p151 = por %p149, %p150
      %p152 = scmp.ne.s32.totalorder %s141, %s142
      %p153 = scmp.eq.s32.totalorder %s18, 0
      %p154 = por %p152, %p153
      %p155 = scmp.ne.s32.totalorder %s141, %s142
      %p156 = scmp.eq.s32.totalorder %s19, 3
      %p157 = por %p155, %p156
      %p159 = scmp.ne.s32.totalorder %s142, %s158
      %p160 = scmp.eq.s32.totalorder %s19, 0
      %p161 = por %p159, %p160
      %p162 = scmp.le.s32.totalorder 1, %s13
      %p163 = scmp.lt.s32.totalorder %s13, 5
      %p164 = pnand %p162, %p163
      %p165 = pneg %p164
      // Predicated region
      $region9: #{tpu_custom_call.1} parent=5 // pred_check
        _
      $region10: #{tpu_custom_call.1} parent=5 // pred_check_branch
        %167 = sbr.rel (%p164) target = $region12
      $region11: #{tpu_custom_call.1} parent=5 // pred_region
        %s168 = ssub.s32 %s13, 1
        // Predicated region
        $region13: #{tpu_custom_call.1} parent=11 // pred_check
          %p169 = pneg %p86
        $region14: #{tpu_custom_call.1} parent=11 // pred_check_branch
          %171 = sbr.rel (%p169) target = $region16
        $region15: #{tpu_custom_call.1} parent=11 // pred_region
          %s173 = ssub.s32 384, 384
          %174 = vsyncadd [#allocation3], %s173
          %s175 = sshll.u32 [#allocation2], 4
          %s176 = int_to_ptr.vmem [resolvable:$true] %s175
          %181 = dma.hbm_to_vmem [thread:$0]  %s2, 384, %s176, [#allocation3], 128, 128, 8
        $region16: #{tpu_custom_call.1} parent=11 // pred_fallthru
          _
        // Predicated region
        $region17: #{tpu_custom_call.1} parent=11 // pred_check
          %p182 = pneg %p107
        $region18: #{tpu_custom_call.1} parent=11 // pred_check_branch
          %184 = sbr.rel (%p182) target = $region20
        $region19: #{tpu_custom_call.1} parent=11 // pred_region
          %s186 = ssub.s32 4096, 4096
          %187 = vsyncadd [#allocation5], %s186
          %s188 = sshll.u32 [#allocation4], 4
          %s189 = int_to_ptr.vmem [resolvable:$true] %s188
          %194 = dma.hbm_to_vmem [thread:$0]  %s3, 4096, %s189, [#allocation5], 128, 128, 8
        $region20: #{tpu_custom_call.1} parent=11 // pred_fallthru
          _
        // Predicated region
        $region21: #{tpu_custom_call.1} parent=11 // pred_check
          %p195 = pneg %p128
        $region22: #{tpu_custom_call.1} parent=11 // pred_check_branch
          %197 = sbr.rel (%p195) target = $region24
        $region23: #{tpu_custom_call.1} parent=11 // pred_region
          %s199 = ssub.s32 256, 256
          %200 = vsyncadd [#allocation5], %s199
          %s202 = sshll.u32 [#allocation6], 4
          %s203 = int_to_ptr.vmem [resolvable:$true] %s202
          %205 = dma.hbm_to_vmem [thread:$0]  %s4, 256, %s203, [#allocation5]
        $region24: #{tpu_custom_call.1} parent=11 // pred_fallthru
          _
      $region12: #{tpu_custom_call.1} parent=5 // pred_fallthru
        _
      %p206 = scmp.lt.s32.totalorder %s13, 4
      // Predicated region
      $region25: #{tpu_custom_call.1} parent=5 // pred_check
        %p207 = pneg %p206
      $region26: #{tpu_custom_call.1} parent=5 // pred_check_branch
        %209 = sbr.rel (%p207) target = $region28
      $region27: #{tpu_custom_call.1} parent=5 // pred_region
        // Predicated region
        $region29: #{tpu_custom_call.1} parent=27 // pred_check
          %p210 = pneg %p33
        $region30: #{tpu_custom_call.1} parent=27 // pred_check_branch
          %212 = sbr.rel (%p210) target = $region32
        $region31: #{tpu_custom_call.1} parent=27 // pred_region
          %p213 = scmp.lt.s32.totalorder %s13, 3
          %s214 = scalar_select %p213, %s13, 3
          %s215 = smul.addr %s214, 8
          %s216 = scalar_lea.vmem %s0, %s215
        $region32: #{tpu_custom_call.1} parent=27 // pred_fallthru
          _
        // Predicated region
        $region33: #{tpu_custom_call.1} parent=27 // pred_check
          %p217 = pneg %p59
        $region34: #{tpu_custom_call.1} parent=27 // pred_check_branch
          %219 = sbr.rel (%p217) target = $region36
        $region35: #{tpu_custom_call.1} parent=27 // pred_region
          %p220 = scmp.lt.s32.totalorder %s13, 3
          %s221 = scalar_select %p220, %s13, 3
          %s222 = smul.addr %s221, 8
          %s223 = scalar_lea.vmem %s1, %s222
        $region36: #{tpu_custom_call.1} parent=27 // pred_fallthru
          _
      $region28: #{tpu_custom_call.1} parent=5 // pred_fallthru
        _
      %p224 = scmp.le.s32.totalorder 1, %s13
      %p225 = scmp.lt.s32.totalorder %s13, 5
      %p226 = pnand %p224, %p225
      %p227 = pneg %p226
      // Predicated region
      $region37: #{tpu_custom_call.1} parent=5 // pred_check
        _
      $region38: #{tpu_custom_call.1} parent=5 // pred_check_branch
        %229 = sbr.rel (%p226) target = $region40
      $region39: #{tpu_custom_call.1} parent=5 // pred_region
        %s230 = ssub.s32 %s13, 1
        // Predicated region
        $region41: #{tpu_custom_call.1} parent=39 // pred_check
          %p231 = pneg %p86
        $region42: #{tpu_custom_call.1} parent=39 // pred_check_branch
          %233 = sbr.rel (%p231) target = $region44
        $region43: #{tpu_custom_call.1} parent=39 // pred_region
          %234 = dma.done [#allocation3], 384
        $region44: #{tpu_custom_call.1} parent=39 // pred_fallthru
          _
        // Predicated region
        $region45: #{tpu_custom_call.1} parent=39 // pred_check
          %p235 = pneg %p107
        $region46: #{tpu_custom_call.1} parent=39 // pred_check_branch
          %237 = sbr.rel (%p235) target = $region48
        $region47: #{tpu_custom_call.1} parent=39 // pred_region
          %238 = dma.done [#allocation5], 4096
        $region48: #{tpu_custom_call.1} parent=39 // pred_fallthru
          _
        // Predicated region
        $region49: #{tpu_custom_call.1} parent=39 // pred_check
          %p239 = pneg %p128
        $region50: #{tpu_custom_call.1} parent=39 // pred_check_branch
          %241 = sbr.rel (%p239) target = $region52
        $region51: #{tpu_custom_call.1} parent=39 // pred_region
          %242 = dma.done [#allocation5], 256
        $region52: #{tpu_custom_call.1} parent=39 // pred_fallthru
          _
        %p243 = scmp.lt.s32.totalorder %s18, 3
        %s244 = scalar_select %p243, %s18, 3
        %s245 = smul.addr %s244, 8
        %s246 = scalar_lea.vmem %s0, %s245
        %p247 = pneg %p39
        %p248 = pneg %p36
        %p249 = scmp.lt.s32.totalorder %s18, 3
        %s250 = scalar_select %p249, %s18, 3
        %s251 = smul.addr %s250, 8
        %s252 = scalar_lea.vmem %s1, %s251
        %p253 = pneg %p65
        %p254 = pneg %p62
        %p255 = pneg %p86
        %p256 = pneg %p83
        %p257 = pneg %p107
        %p258 = pneg %p104
        %p259 = pneg %p128
        %p260 = pneg %p125
        %p261 = pneg %p154
        %p262 = pneg %p151
        %p263 = scmp.lt.s32.totalorder %s18, 3
        %s264 = scalar_select %p263, %s18, 3
        %s265 = smul.addr %s264, 8
        %s266 = scalar_lea.vmem %s5, %s265
        %p267 = scmp.lt.s32.totalorder %s18, 3
        %s268 = scalar_select %p267, %s18, 3
        %s269 = smul.addr %s268, 8
        %s270 = scalar_lea.vmem %s0, %s269
        %p271 = scmp.lt.s32.totalorder %s18, 3
        %s272 = scalar_select %p271, %s18, 3
        %s273 = smul.addr %s272, 8
        %s274 = scalar_lea.vmem %s1, %s273
        %p275 = scmp.lt.s32.totalorder %s18, 3
        %s276 = scalar_select %p275, %s18, 3
        %s277 = smul.addr %s276, 8
        %s278 = scalar_lea.vmem %s5, %s277
        %v280 = vld [vmem:[#allocation6] ss:$8 sm:$0x3]
        %s281 = scalar_lea.vmem [#allocation6], 1
        %v282 = vld [vmem:[%s281] ss:$8 sm:$0x3]
        %s283 = scalar_lea.vmem [#allocation6], 2
        %v284 = vld [vmem:[%s283] ss:$8 sm:$0x3]
        %s285 = scalar_lea.vmem [#allocation6], 3
        %v286 = vld [vmem:[%s285] ss:$8 sm:$0x3]
        %s287 = scalar_lea.vmem [#allocation6], 4
        %v288 = vld [vmem:[%s287] ss:$8 sm:$0x3]
        %v289 = vld [vmem:[#allocation6 + $0x5] ss:$0 sm:$0xff]
        %v290 = vld [vmem:[%s270] sm:$0xff]
        %v291 = vpack.c.bf16 %v290, %v290
        %v292 = vld [vmem:[#allocation2] sm:$0xff]
        %v293 = vld [vmem:[#allocation2 + $0x8] sm:$0xff]
        %v294 = vld [vmem:[#allocation2 + $0x10] sm:$0xff]
        %v296 = vlaneseq
        %v297 = vshrl.u32 %v296, 7
        %v298 = vsub.s32 0, %v297
        %v299 = vrot.slane %v280, %v298
        %v300 = vlaneseq
        %v301 = vshrl.u32 %v300, 7
        %v302 = vsub.s32 1, %v301
        %v303 = vrot.slane %v280, %v302
        %v309 = vunpack.c.l.b16 %v292
        %v310 = vunpack.c.h.b16 %v292
        %v311 = vunpack.c.l.b16 %v293
        %v312 = vunpack.c.h.b16 %v293
        %v313 = vunpack.c.l.b16 %v294
        %v314 = vunpack.c.h.b16 %v294
        %v315 = vpack.c.b16 %v311, %v309
        %v316 = vpack.c.b16 %v312, %v310
        %v317 = vpack.c.b16 %v313, %v313
        %v318 = vpack.c.b16 %v314, %v314
        %vm321 = vcmask 195584
        %v323 = vsel %vm321, %v291, 0
        %vm325 = vcmask 1043456
        %v327 = vsel %vm325, %v317, 0
        %v330 = vsel %vm325, %v318, 0
        %332 = vmatprep.subr.bf16.mxu0 0
        %333 = vmatpush1.bf16.msra.mxu0 0
        %334 = vmatprep.subr.bf16.mxu0 0
        %335 = vmatpush1.bf16.msra.mxu0 0
        %336 = vmatprep.subr.bf16.mxu0 0
        %337 = vmatpush1.bf16.msra.mxu0 0
        %338 = vmatprep.subr.bf16.mxu0 0
        %339 = vmatpush1.bf16.msra.mxu0 0
        %340 = vmatprep.subr.bf16.mxu0 0
        %341 = vmatpush1.bf16.msra.mxu0 0
        %342 = vmatprep.subr.bf16.mxu0 0
        %343 = vmatpush1.bf16.msra.mxu0 0
        %344 = vmatprep.subr.bf16.mxu0 %v330
        %345 = vmatpush1.bf16.msra.mxu0 %v327
        %346 = vmatprep.subr.bf16.mxu0 %v316
        %347 = vmatpush1.bf16.msra.mxu0 %v315
        %348 = vmatprep.subr.bf16.mxu0 0
        %349 = vmatpush2.bf16.msra.mxu0 0
        %350 = vmatprep.subr.bf16.mxu0 0
        %351 = vmatpush2.bf16.msra.mxu0 0
        %352 = vmatprep.subr.bf16.mxu0 0
        %353 = vmatpush2.bf16.msra.mxu0 0
        %354 = vmatprep.subr.bf16.mxu0 0
        %355 = vmatpush2.bf16.msra.mxu0 0
        %356 = vmatprep.subr.bf16.mxu0 0
        %357 = vmatpush2.bf16.msra.mxu0 0
        %358 = vmatprep.subr.bf16.mxu0 0
        %359 = vmatpush2.bf16.msra.mxu0 0
        %360 = vmatprep.subr.bf16.mxu0 0
        %361 = vmatpush2.bf16.msra.mxu0 0
        %362 = vmatprep.subr.bf16.mxu0 0
        %363 = vmatpush2.bf16.msra.mxu0 0
        %364 = vmatprep.mubr.bf16.mxu0 0
        %365 = vmatmul.mubr.bf16.gmra.mxu0 %v323
        %v366 = vpop.f32.mrf.mxu0
        %v367 = vadd.f32 %v299, %v366
        %v368 = vpop.f32.mrf.mxu0
        %v369 = vadd.f32 %v303, %v368
        %v370 = vpop.f32.mrf.mxu0
        %v371 = vpop.f32.mrf.mxu0
        %372 = vdwg.mxu0
        %v373 = vld [vmem:[%s274] sm:$0xff]
        %s374 = scalar_lea.vmem [#allocation6], 6
        %v375 = vld [vmem:[%s374] ss:$8 sm:$0x3]
        %377 = vset.pattern.permute.xlu0 0
        %378 = vperm.xlu0 %377, %v373
        %v379 = vpop.permute.xlu0 %378
        %v382 = vlaneseq
        %v383 = vshrl.u32 %v382, 7
        %v384 = vsub.s32 0, %v383
        %v385 = vrot.slane %v375, %v384
        %v386 = vlaneseq
        %v387 = vshrl.u32 %v386, 7
        %v388 = vsub.s32 1, %v387
        %v389 = vrot.slane %v375, %v388
        %v392 = vmul.f32 %v379, %v385
        %v393 = vmul.f32 %v379, %v389
        %v394 = vadd.f32 %v367, %v392
        %v395 = vadd.f32 %v369, %v393
        %s396 = scalar_lea.vmem [#allocation6], 7
        %v397 = vld [vmem:[%s396] ss:$8 sm:$0x3]
        %398 = vset.pattern.permute.xlu0 1
        %399 = vperm.xlu0 %398, %v373
        %v400 = vpop.permute.xlu0 %399
        %v403 = vlaneseq
        %v404 = vshrl.u32 %v403, 7
        %v405 = vsub.s32 0, %v404
        %v406 = vrot.slane %v397, %v405
        %v407 = vlaneseq
        %v408 = vshrl.u32 %v407, 7
        %v409 = vsub.s32 1, %v408
        %v410 = vrot.slane %v397, %v409
        %v413 = vmul.f32 %v400, %v406
        %v414 = vmul.f32 %v400, %v410
        %v415 = vadd.f32 %v394, %v413
        %v416 = vadd.f32 %v395, %v414
        %v417 = vmax.f32 %v415, 0.0
        %v418 = vmax.f32 %v416, 0.0
        %v419 = vrot.slane %v417, 4
        %v420 = vadd.f32 %v417, %v419
        %v421 = vrot.slane %v420, 2
        %v422 = vadd.f32 %v420, %v421
        %v423 = vrot.slane %v422, 1
        %v424 = vadd.f32 %v422, %v423
        %v425 = vrot.slane %v418, 4
        %v426 = vadd.f32 %v418, %v425
        %v427 = vrot.slane %v426, 2
        %v428 = vadd.f32 %v426, %v427
        %v429 = vrot.slane %v428, 1
        %v430 = vadd.f32 %v428, %v429
        %v431 = vrcp.pop 8.0
        %v432 = vmul.f32 %v424, %v431
        %v433 = vmul.f32 %v430, %v431
        %v434 = vsub.f32 %v417, %v432
        %v435 = vsub.f32 %v418, %v433
        %v436 = vmul.f32 %v434, %v434
        %v437 = vmul.f32 %v435, %v435
        %v438 = vrot.slane %v436, 4
        %v439 = vadd.f32 %v436, %v438
        %v440 = vrot.slane %v439, 2
        %v441 = vadd.f32 %v439, %v440
        %v442 = vrot.slane %v441, 1
        %v443 = vadd.f32 %v441, %v442
        %v444 = vrot.slane %v437, 4
        %v445 = vadd.f32 %v437, %v444
        %v446 = vrot.slane %v445, 2
        %v447 = vadd.f32 %v445, %v446
        %v448 = vrot.slane %v447, 1
        %v449 = vadd.f32 %v447, %v448
        %v450 = vmul.f32 %v443, %v431
        %v451 = vmul.f32 %v449, %v431
        %v452 = vadd.f32 %v450, 1e-05
        %v453 = vadd.f32 %v451, 1e-05
        %v454 = vrsqrt.pop %v452
        %v455 = vrsqrt.pop %v453
        %v456 = vmul.f32 %v434, %v454
        %v457 = vmul.f32 %v435, %v455
        %v459 = vlaneseq
        %v460 = vshrl.u32 %v459, 7
        %v461 = vsub.s32 0, %v460
        %v462 = vrot.slane %v282, %v461
        %v463 = vlaneseq
        %v464 = vshrl.u32 %v463, 7
        %v465 = vsub.s32 1, %v464
        %v466 = vrot.slane %v282, %v465
        %v469 = vmul.f32 %v456, %v462
        %v470 = vmul.f32 %v457, %v466
        %v472 = vlaneseq
        %v473 = vshrl.u32 %v472, 7
        %v474 = vsub.s32 0, %v473
        %v475 = vrot.slane %v284, %v474
        %v476 = vlaneseq
        %v477 = vshrl.u32 %v476, 7
        %v478 = vsub.s32 1, %v477
        %v479 = vrot.slane %v284, %v478
        %v482 = vadd.f32 %v469, %v475
        %v483 = vadd.f32 %v470, %v479
        %v484 = vpack.c.bf16 %v482, %v482
        %v485 = vpack.c.bf16 %v483, %v483
        %v486 = vld [vmem:[#allocation4] sm:$0xff]
        %v487 = vld [vmem:[#allocation4 + $0x8] sm:$0xff]
        %v488 = vld [vmem:[#allocation4 + $0x10] sm:$0xff]
        %v489 = vld [vmem:[#allocation4 + $0x18] sm:$0xff]
        %v490 = vld [vmem:[#allocation4 + $0x20] sm:$0xff]
        %v491 = vld [vmem:[#allocation4 + $0x28] sm:$0xff]
        %v492 = vld [vmem:[#allocation4 + $0x30] sm:$0xff]
        %v493 = vld [vmem:[#allocation4 + $0x38] sm:$0xff]
        %v494 = vld [vmem:[#allocation4 + $0x40] sm:$0xff]
        %v495 = vld [vmem:[#allocation4 + $0x48] sm:$0xff]
        %v496 = vld [vmem:[#allocation4 + $0x50] sm:$0xff]
        %v497 = vld [vmem:[#allocation4 + $0x58] sm:$0xff]
        %v498 = vld [vmem:[#allocation4 + $0x60] sm:$0xff]
        %v499 = vld [vmem:[#allocation4 + $0x68] sm:$0xff]
        %v500 = vld [vmem:[#allocation4 + $0x70] sm:$0xff]
        %v501 = vld [vmem:[#allocation4 + $0x78] sm:$0xff]
        %v502 = vld [vmem:[#allocation4 + $0x80] sm:$0xff]
        %v503 = vld [vmem:[#allocation4 + $0x88] sm:$0xff]
        %v504 = vld [vmem:[#allocation4 + $0x90] sm:$0xff]
        %v505 = vld [vmem:[#allocation4 + $0x98] sm:$0xff]
        %v506 = vld [vmem:[#allocation4 + $0xa0] sm:$0xff]
        %v507 = vld [vmem:[#allocation4 + $0xa8] sm:$0xff]
        %v508 = vld [vmem:[#allocation4 + $0xb0] sm:$0xff]
        %v509 = vld [vmem:[#allocation4 + $0xb8] sm:$0xff]
        %v510 = vld [vmem:[#allocation4 + $0xc0] sm:$0xff]
        %v511 = vld [vmem:[#allocation4 + $0xc8] sm:$0xff]
        %v512 = vld [vmem:[#allocation4 + $0xd0] sm:$0xff]
        %v513 = vld [vmem:[#allocation4 + $0xd8] sm:$0xff]
        %v514 = vld [vmem:[#allocation4 + $0xe0] sm:$0xff]
        %v515 = vld [vmem:[#allocation4 + $0xe8] sm:$0xff]
        %v516 = vld [vmem:[#allocation4 + $0xf0] sm:$0xff]
        %v517 = vld [vmem:[#allocation4 + $0xf8] sm:$0xff]
        %v519 = vlaneseq
        %v520 = vshrl.u32 %v519, 7
        %v521 = vsub.s32 0, %v520
        %v522 = vrot.slane %v286, %v521
        %v523 = vlaneseq
        %v524 = vshrl.u32 %v523, 7
        %v525 = vsub.s32 1, %v524
        %v526 = vrot.slane %v286, %v525
        %v561 = vunpack.c.l.b16 %v486
        %v562 = vunpack.c.h.b16 %v486
        %v563 = vunpack.c.l.b16 %v487
        %v564 = vunpack.c.h.b16 %v487
        %v565 = vunpack.c.l.b16 %v488
        %v566 = vunpack.c.h.b16 %v488
        %v567 = vunpack.c.l.b16 %v489
        %v568 = vunpack.c.h.b16 %v489
        %v569 = vunpack.c.l.b16 %v490
        %v570 = vunpack.c.h.b16 %v490
        %v571 = vunpack.c.l.b16 %v491
        %v572 = vunpack.c.h.b16 %v491
        %v573 = vunpack.c.l.b16 %v492
        %v574 = vunpack.c.h.b16 %v492
        %v575 = vunpack.c.l.b16 %v493
        %v576 = vunpack.c.h.b16 %v493
        %v577 = vunpack.c.l.b16 %v494
        %v578 = vunpack.c.h.b16 %v494
        %v579 = vunpack.c.l.b16 %v495
        %v580 = vunpack.c.h.b16 %v495
        %v581 = vunpack.c.l.b16 %v496
        %v582 = vunpack.c.h.b16 %v496
        %v583 = vunpack.c.l.b16 %v497
        %v584 = vunpack.c.h.b16 %v497
        %v585 = vunpack.c.l.b16 %v498
        %v586 = vunpack.c.h.b16 %v498
        %v587 = vunpack.c.l.b16 %v499
        %v588 = vunpack.c.h.b16 %v499
        %v589 = vunpack.c.l.b16 %v500
        %v590 = vunpack.c.h.b16 %v500
        %v591 = vunpack.c.l.b16 %v501
        %v592 = vunpack.c.h.b16 %v501
        %v593 = vunpack.c.l.b16 %v502
        %v594 = vunpack.c.h.b16 %v502
        %v595 = vunpack.c.l.b16 %v503
        %v596 = vunpack.c.h.b16 %v503
        %v597 = vunpack.c.l.b16 %v504
        %v598 = vunpack.c.h.b16 %v504
        %v599 = vunpack.c.l.b16 %v505
        %v600 = vunpack.c.h.b16 %v505
        %v601 = vunpack.c.l.b16 %v506
        %v602 = vunpack.c.h.b16 %v506
        %v603 = vunpack.c.l.b16 %v507
        %v604 = vunpack.c.h.b16 %v507
        %v605 = vunpack.c.l.b16 %v508
        %v606 = vunpack.c.h.b16 %v508
        %v607 = vunpack.c.l.b16 %v509
        %v608 = vunpack.c.h.b16 %v509
        %v609 = vunpack.c.l.b16 %v510
        %v610 = vunpack.c.h.b16 %v510
        %v611 = vunpack.c.l.b16 %v511
        %v612 = vunpack.c.h.b16 %v511
        %v613 = vunpack.c.l.b16 %v512
        %v614 = vunpack.c.h.b16 %v512
        %v615 = vunpack.c.l.b16 %v513
        %v616 = vunpack.c.h.b16 %v513
        %v617 = vunpack.c.l.b16 %v514
        %v618 = vunpack.c.h.b16 %v514
        %v619 = vunpack.c.l.b16 %v515
        %v620 = vunpack.c.h.b16 %v515
        %v621 = vunpack.c.l.b16 %v516
        %v622 = vunpack.c.h.b16 %v516
        %v623 = vunpack.c.l.b16 %v517
        %v624 = vunpack.c.h.b16 %v517
        %v625 = vpack.c.b16 %v563, %v561
        %v626 = vpack.c.b16 %v564, %v562
        %v627 = vpack.c.b16 %v567, %v565
        %v628 = vpack.c.b16 %v568, %v566
        %v629 = vpack.c.b16 %v571, %v569
        %v630 = vpack.c.b16 %v572, %v570
        %v631 = vpack.c.b16 %v575, %v573
        %v632 = vpack.c.b16 %v576, %v574
        %v633 = vpack.c.b16 %v579, %v577
        %v634 = vpack.c.b16 %v580, %v578
        %v635 = vpack.c.b16 %v583, %v581
        %v636 = vpack.c.b16 %v584, %v582
        %v637 = vpack.c.b16 %v587, %v585
        %v638 = vpack.c.b16 %v588, %v586
        %v639 = vpack.c.b16 %v591, %v589
        %v640 = vpack.c.b16 %v592, %v590
        %v641 = vpack.c.b16 %v595, %v593
        %v642 = vpack.c.b16 %v596, %v594
        %v643 = vpack.c.b16 %v599, %v597
        %v644 = vpack.c.b16 %v600, %v598
        %v645 = vpack.c.b16 %v603, %v601
        %v646 = vpack.c.b16 %v604, %v602
        %v647 = vpack.c.b16 %v607, %v605
        %v648 = vpack.c.b16 %v608, %v606
        %v649 = vpack.c.b16 %v611, %v609
        %v650 = vpack.c.b16 %v612, %v610
        %v651 = vpack.c.b16 %v615, %v613
        %v652 = vpack.c.b16 %v616, %v614
        %v653 = vpack.c.b16 %v619, %v617
        %v654 = vpack.c.b16 %v620, %v618
        %v655 = vpack.c.b16 %v623, %v621
        %v656 = vpack.c.b16 %v624, %v622
        %689 = vmatprep.subr.bf16.mxu0 %v640
        %690 = vmatpush1.bf16.msra.mxu0 %v639
        %691 = vmatprep.subr.bf16.mxu0 %v638
        %692 = vmatpush1.bf16.msra.mxu0 %v637
        %693 = vmatprep.subr.bf16.mxu0 %v636
        %694 = vmatpush1.bf16.msra.mxu0 %v635
        %695 = vmatprep.subr.bf16.mxu0 %v634
        %696 = vmatpush1.bf16.msra.mxu0 %v633
        %697 = vmatprep.subr.bf16.mxu0 %v632
        %698 = vmatpush1.bf16.msra.mxu0 %v631
        %699 = vmatprep.subr.bf16.mxu0 %v630
        %700 = vmatpush1.bf16.msra.mxu0 %v629
        %701 = vmatprep.subr.bf16.mxu0 %v628
        %702 = vmatpush1.bf16.msra.mxu0 %v627
        %703 = vmatprep.subr.bf16.mxu0 %v626
        %704 = vmatpush1.bf16.msra.mxu0 %v625
        %705 = vmatprep.subr.bf16.mxu0 %v656
        %706 = vmatpush2.bf16.msra.mxu0 %v655
        %707 = vmatprep.subr.bf16.mxu0 %v654
        %708 = vmatpush2.bf16.msra.mxu0 %v653
        %709 = vmatprep.subr.bf16.mxu0 %v652
        %710 = vmatpush2.bf16.msra.mxu0 %v651
        %711 = vmatprep.subr.bf16.mxu0 %v650
        %712 = vmatpush2.bf16.msra.mxu0 %v649
        %713 = vmatprep.subr.bf16.mxu0 %v648
        %714 = vmatpush2.bf16.msra.mxu0 %v647
        %715 = vmatprep.subr.bf16.mxu0 %v646
        %716 = vmatpush2.bf16.msra.mxu0 %v645
        %717 = vmatprep.subr.bf16.mxu0 %v644
        %718 = vmatpush2.bf16.msra.mxu0 %v643
        %719 = vmatprep.subr.bf16.mxu0 %v642
        %720 = vmatpush2.bf16.msra.mxu0 %v641
        %721 = vmatprep.mubr.bf16.mxu0 %v485
        %722 = vmatmul.mubr.bf16.gmra.mxu0 %v484
        %v723 = vpop.f32.mrf.mxu0
        %v724 = vadd.f32 %v522, %v723
        %v725 = vpop.f32.mrf.mxu0
        %v726 = vadd.f32 %v526, %v725
        %v727 = vpop.f32.mrf.mxu0
        %v728 = vpop.f32.mrf.mxu0
        %729 = vdwg.mxu0
        %v730 = vmax.f32 %v724, 0.0
        %v731 = vmax.f32 %v726, 0.0
        %v733 = vlaneseq
        %v734 = vshrl.u32 %v733, 7
        %v735 = vsub.s32 0, %v734
        %v736 = vrot.slane %v288, %v735
        %v737 = vlaneseq
        %v738 = vshrl.u32 %v737, 7
        %v739 = vsub.s32 1, %v738
        %v740 = vrot.slane %v288, %v739
        %v743 = vmul.f32 %v730, %v736
        %v744 = vmul.f32 %v731, %v740
        %v745 = vadd.f32 %v743, %v744
        %746 = vadd.xlane.f32.xlu0 %v745
        %v747 = vpop.xlane.xlu0 %746
        %v748 = vadd.f32 %v747, %v289
        %vm749 = vcmask 7168
        %750 = vst.msk [vmem:[%s278] sm:$0xff] %vm749, %v748
        %p751 = scmp.lt.s32.totalorder %s18, 3
        %s752 = scalar_select %p751, %s18, 3
        %s753 = smul.addr %s752, 8
        %s754 = scalar_lea.vmem %s5, %s753
        // Predicated region
        $region53: #{tpu_custom_call.1} parent=39 // pred_check
          %p755 = pneg %p151
        $region54: #{tpu_custom_call.1} parent=39 // pred_check_branch
          %757 = sbr.rel (%p755) target = $region56
        $region55: #{tpu_custom_call.1} parent=39 // pred_region
          _
        $region56: #{tpu_custom_call.1} parent=39 // pred_fallthru
          _
      $region40: #{tpu_custom_call.1} parent=5 // pred_fallthru
        _
      %p758 = scmp.le.s32.totalorder 2, %s13
      // Predicated region
      $region57: #{tpu_custom_call.1} parent=5 // pred_check
        %p759 = pneg %p758
      $region58: #{tpu_custom_call.1} parent=5 // pred_check_branch
        %761 = sbr.rel (%p759) target = $region60
      $region59: #{tpu_custom_call.1} parent=5 // pred_region
        %s762 = ssub.s32 %s13, 2
        // Predicated region
        $region61: #{tpu_custom_call.1} parent=59 // pred_check
          %p763 = pneg %p157
        $region62: #{tpu_custom_call.1} parent=59 // pred_check_branch
          %765 = sbr.rel (%p763) target = $region64
        $region63: #{tpu_custom_call.1} parent=59 // pred_region
          %p766 = scmp.lt.s32.totalorder %s19, 3
          %s767 = scalar_select %p766, %s19, 3
          %s768 = smul.addr %s767, 8
          %s769 = scalar_lea.vmem %s5, %s768
        $region64: #{tpu_custom_call.1} parent=59 // pred_fallthru
          _
      $region60: #{tpu_custom_call.1} parent=5 // pred_fallthru
        _
    $region6: #{tpu_custom_call.1} parent=1 // loop_footer
      %s17 = sadd.s32 1, %s13
    $region7: #{tpu_custom_call.1} parent=1 // loop_footer_branch
      %12 = sbr.rel target = $region3
    $region8: #{tpu_custom_call.1} parent=1 // loop_exit
      _
    %770 = vsyncpa [#allocation3], 1
    %s771 = scalar_lea.sflag [#allocation3], 1
    %772 = vsyncpa %s771, 1
    %773 = vsyncpa [#allocation5], 1

</llo_original>
